<compile_context>
chip_gen: v7x
topology: tpu7x:2x2x1
jax: 0.10.0
libtpu: 0.0.40
codegen_flags: <defaults>
</compile_context>

<pallas_src>
import functools

import jax
import jax.numpy as jnp
import numpy as np
from jax.experimental import pallas as pl
from jax.experimental.pallas import tpu as pltpu

_LANES = 128
_MAX_LANE_GROUPS = 1024          # cap on 128-lane groups per block (code size)
_TARGET_BLOCK_BYTES = 4 << 20    # ~4 MiB per input block (1-8 MiB sweet spot)


def _round_up(x, m):
    return ((x + m - 1) // m) * m


def _round_down(x, m):
    return (x // m) * m


def _abs_pow(x, p):
    """|x|**p with static p; avoids EUP log/exp for small integer exponents."""
    if p == 1.0:
        return jnp.abs(x)
    if p == 2.0:
        return x * x                      # even power: no abs needed
    if p == 3.0:
        ax = jnp.abs(x)
        return ax * ax * ax
    if p == 4.0:
        x2 = x * x
        return x2 * x2
    return jnp.abs(x) ** p                # generic fallback


def _root(x, p):
    """x**(1/p) with static p; avoids pow for p in {1, 2, 4}."""
    if p == 1.0:
        return x
    if p == 2.0:
        return jnp.sqrt(x)
    if p == 4.0:
        return jnp.sqrt(jnp.sqrt(x))
    return x ** (1.0 / p)


def _tree_sum(parts):
    """Pairwise (tree) sum of a non-empty list of equal-shaped arrays."""
    while len(parts) > 1:
        nxt = []
        for i in range(0, len(parts) - 1, 2):
            nxt.append(parts[i] + parts[i + 1])
        if len(parts) % 2:
            nxt.append(parts[-1])
        parts = nxt
    return parts[0]


def _vmem_cap_bytes():
    """Chip-aware VMEM limit with headroom (48 MiB on 64-MiB parts, 100 MiB on 128-MiB parts)."""
    try:
        cap = int(getattr(pltpu.get_tpu_info(), "vmem_capacity_bytes", 64 << 20))
    except Exception:
        cap = 64 << 20
    if cap >= (128 << 20):
        return 100 << 20      # v5e / v6e
    return 48 << 20           # v7x (64 MiB physical per TC)


def _lp_loss_partial_kernel(y_ref, t_ref, out_ref, *, p, feat, tile_f, acc_w,
                            blocks_per_split, last_block, mask_mode):
    s = pl.program_id(0)                 # split index ("parallel" axis)
    k = pl.program_id(1)                 # feature-block index within the split
    g = s * blocks_per_split + k         # global feature-block index
    n_chunks = tile_f // acc_w           # static

    @pl.when(k == 0)
    def _init():
        out_ref[...] = jnp.zeros_like(out_ref)

    def chunk_contrib(start, masked):
        # Widen to f32 in-register (inputs may be bf16); pure VPU work.
        d = (y_ref[:, start:start + acc_w].astype(jnp.float32)
             - t_ref[:, start:start + acc_w].astype(jnp.float32))
        if masked:
            # Ragged last block / clamped out-of-range block: zero cols >= feat.
            col = (jax.lax.broadcasted_iota(jnp.int32, d.shape, 1)
                   + g * tile_f + start)
            d = jnp.where(col < feat, d, 0.0)
        return _abs_pow(d, p)

    def accumulate(masked):
        # Fold static acc_w-wide chunks into up to 4 independent chains
        # (exposes the 4 VALUs, bounds vreg live ranges), tree-combine, then
        # one RMW of the resident lane-dense output block per grid step.
        n_acc = min(4, n_chunks)
        accs = [chunk_contrib(j * acc_w, masked) for j in range(n_acc)]
        for j in range(n_acc, n_chunks):
            accs[j % n_acc] = accs[j % n_acc] + chunk_contrib(j * acc_w, masked)
        out_ref[...] += _tree_sum(accs)

    if mask_mode == "none":
        accumulate(masked=False)
    elif mask_mode == "always":
        accumulate(masked=True)
    else:  # "gated": unmasked fast path for interior blocks, masked tail only.
        @pl.when(g < last_block)
        def _interior():
            accumulate(masked=False)

        @pl.when(g >= last_block)
        def _tail():
            accumulate(masked=True)


def lp_loss(y, y_target, p, tile_f=None):
    """Pallas implementation of LPLoss(p).forward(y, y_target)."""
    assert y.shape == y_target.shape
    p = float(p)
    assert p > 0.0, "LPLoss requires p > 0"

    B = y.shape[0]
    F = int(np.prod(y.shape[1:])) if y.ndim > 1 else 1
    numel = float(np.prod(y.shape))

    # Stream inputs in their native dtype; reshape (B, F) is layout-free.
    yf = jnp.reshape(y, (B, F))
    tf = jnp.reshape(y_target, (B, F))

    itemsize = jnp.dtype(yf.dtype).itemsize
    vmem_cap = _vmem_cap_bytes()

    # --- Tile policy: byte budget that accounts for B, capped by a lane-group
    # limit (bounds unrolled code size for small B) and by the padded F.
    if tile_f is None:
        budget_lanes = max(_TARGET_BLOCK_BYTES // (B * itemsize), _LANES)
        tile_f = _round_down(int(budget_lanes), _LANES)
        tile_f = min(tile_f, _MAX_LANE_GROUPS * _LANES)
    tile_f = int(max(_LANES, min(_round_up(int(tile_f), _LANES),
                                 _round_up(F, _LANES))))

    num_blocks = int(pl.cdiv(F, tile_f))
    num_splits = 2 if num_blocks >= 2 else 1          # megacore share on v7x
    bps = int(pl.cdiv(num_blocks, num_splits))        # feature-blocks per split
    last_block = num_blocks - 1
    need_mask = (F % tile_f != 0) or (num_splits * bps != num_blocks)
    if not need_mask:
        mask_mode = "none"
    elif num_blocks == 1:
        mask_mode = "always"
    else:
        mask_mode = "gated"

    # Accumulator width: widest of 512/256/128 lanes dividing tile_f.
    acc_w = _LANES
    for w in (512, 256):
        if tile_f % w == 0:
            acc_w = w
            break

    block_bytes = B * tile_f * itemsize
    # 2 inputs x 2 pipeline buffers + output + headroom, under the chip cap.
    vmem_bytes = int(min(vmem_cap, max(6 * block_bytes + (4 << 20), 32 << 20)))

    def in_index(s, k):
        # Clamp out-of-range steps of the last split to the last real block;
        # their contribution is masked to zero in-kernel.
        return (0, jnp.minimum(s * bps + k, last_block))

    kernel = functools.partial(
        _lp_loss_partial_kernel, p=p, feat=F, tile_f=tile_f, acc_w=acc_w,
        blocks_per_split=bps, last_block=last_block, mask_mode=mask_mode)

    partial = pl.pallas_call(
        kernel,
        out_shape=jax.ShapeDtypeStruct((B, num_splits * acc_w), jnp.float32),
        grid_spec=pltpu.PrefetchScalarGridSpec(
            num_scalar_prefetch=0,
            grid=(num_splits, bps),
            in_specs=[
                pl.BlockSpec((B, tile_f), in_index),
                pl.BlockSpec((B, tile_f), in_index),
            ],
            out_specs=pl.BlockSpec((B, acc_w), lambda s, k: (0, s)),
        ),
        compiler_params=pltpu.CompilerParams(
            dimension_semantics=("parallel", "arbitrary"),
            vmem_limit_bytes=vmem_bytes,
        ),
        cost_estimate=pl.CostEstimate(
            flops=int(3 * B * F),
            transcendentals=int(0 if p in (1.0, 2.0, 3.0, 4.0) else 2 * B * F),
            bytes_accessed=int(2 * B * F * itemsize
                               + 4 * B * num_splits * acc_w),
        ),
    )(yf, tf)

    # Finalize in the wrapper: per-row sum across splits/lanes, p-th root,
    # batch sum, divide by numel (a few dozen scalars; free).
    row_sums = jnp.sum(partial, axis=1)                # (B,)
    norms = _root(row_sums, p)
    return jnp.sum(norms) / numel


def lp_loss_reference(y, y_target, p):
    d = (y.astype(jnp.float32) - y_target.astype(jnp.float32)).reshape(y.shape[0], -1)
    norms = jnp.sum(jnp.abs(d) ** p, axis=1) ** (1.0 / p)
    return jnp.sum(norms) / float(np.prod(y.shape))


if __name__ == "__main__":
    key = jax.random.PRNGKey(0)
    k1, k2, k3, k4, k5, k6 = jax.random.split(key, 6)
    p = 2.0  # LPLoss(p=2)

    # Case 1: f32 NCHW (B=2,C=4,H=16,W=16): F=1024, single block, no mask.
    y = jax.random.normal(k1, (2, 4, 16, 16), dtype=jnp.float32)
    t = jax.random.normal(k2, (2, 4, 16, 16), dtype=jnp.float32)
    out = jax.block_until_ready(lp_loss(y, t, p))
    np.testing.assert_allclose(np.asarray(out),
                               np.asarray(lp_loss_reference(y, t, p)),
                               rtol=1e-5, atol=1e-6)

    # Case 2: bf16 inputs (native-dtype streaming), F=1152 -> 9 lane chunks.
    y2 = jax.random.normal(k3, (2, 4, 16, 18), dtype=jnp.float32).astype(jnp.bfloat16)
    t2 = jax.random.normal(k4, (2, 4, 16, 18), dtype=jnp.float32).astype(jnp.bfloat16)
    out2 = jax.block_until_ready(lp_loss(y2, t2, p))
    np.testing.assert_allclose(np.asarray(out2),
                               np.asarray(lp_loss_reference(y2, t2, p)),
                               rtol=1e-4, atol=1e-6)

    # Case 3: F=231 (not a multiple of 128) -> single ragged block, masked path.
    y3 = jax.random.normal(k5, (2, 3, 7, 11), dtype=jnp.float32)
    t3 = jax.random.normal(k6, (2, 3, 7, 11), dtype=jnp.float32)
    out3 = jax.block_until_ready(lp_loss(y3, t3, p))
    np.testing.assert_allclose(np.asarray(out3),
                               np.asarray(lp_loss_reference(y3, t3, p)),
                               rtol=1e-5, atol=1e-6)

    # Case 4: small tile_f override -> 5 feature blocks, 2-way parallel split,
    # clamped out-of-range step and pl.when-gated ragged-tail mask.
    y4 = y2.astype(jnp.float32)
    t4 = t2.astype(jnp.float32)
    out4 = jax.block_until_ready(lp_loss(y4, t4, p, tile_f=256))
    np.testing.assert_allclose(np.asarray(out4),
                               np.asarray(lp_loss_reference(y4, t4, p)),
                               rtol=1e-5, atol=1e-6)

    print("KERNEL_OK")
</pallas_src>

<mosaic_0001>
module attributes {stable_mosaic.version = 11 : i64} {
  func.func @_lp_loss_partial_kernel(%arg0: i32, %arg1: i32, %arg2: memref<2x1024xf32, #tpu.memory_space<vmem>>, %arg3: memref<2x1024xf32, #tpu.memory_space<vmem>>, %arg4: memref<2x512xf32, #tpu.memory_space<vmem>>) attributes {dimension_semantics = [#tpu.dimension_semantics<parallel>, #tpu.dimension_semantics<arbitrary>], iteration_bounds = array<i64: 1, 1>, scalar_prefetch = 0 : i64, scratch_operands = 0 : i64, tpu.core_type = #tpu.core_type<tc>, window_params = [{transform_indices = @transform_0, window_bounds = array<i64: 2, 1024>}, {transform_indices = @transform_1, window_bounds = array<i64: 2, 1024>}, {transform_indices = @transform_2, window_bounds = array<i64: 2, 512>}]} {
    %c0_i32 = arith.constant 0 : i32
    %0 = arith.cmpi eq, %arg1, %c0_i32 : i32
    %1 = arith.extui %0 : i1 to i32
    %c0_i32_0 = arith.constant 0 : i32
    %2 = arith.cmpi ne, %1, %c0_i32_0 : i32
    scf.if %2 {
      %cst = arith.constant 0.000000e+00 : f32
      %15 = vector.broadcast %cst : f32 to vector<2x512xf32>
      %c0_11 = arith.constant 0 : index
      %c0_12 = arith.constant 0 : index
      %16 = vector.load %arg4[%c0_11, %c0_12] : memref<2x512xf32, #tpu.memory_space<vmem>>, vector<2x512xf32>
      tpu.vector_store %arg4[%c0_11, %c0_12], %15 {strides = array<i32>} : memref<2x512xf32, #tpu.memory_space<vmem>>, vector<2x512xf32>,
    } else {
    }
    %c0 = arith.constant 0 : index
    %c0_1 = arith.constant 0 : index
    %3 = vector.load %arg2[%c0, %c0_1] : memref<2x1024xf32, #tpu.memory_space<vmem>>, vector<2x512xf32>
    %c0_2 = arith.constant 0 : index
    %c0_3 = arith.constant 0 : index
    %4 = vector.load %arg3[%c0_2, %c0_3] : memref<2x1024xf32, #tpu.memory_space<vmem>>, vector<2x512xf32>
    %5 = arith.subf %3, %4 : vector<2x512xf32>
    %6 = arith.mulf %5, %5 : vector<2x512xf32>
    %c0_4 = arith.constant 0 : index
    %c512 = arith.constant 512 : index
    %7 = vector.load %arg2[%c0_4, %c512] : memref<2x1024xf32, #tpu.memory_space<vmem>>, vector<2x512xf32>
    %c0_5 = arith.constant 0 : index
    %c512_6 = arith.constant 512 : index
    %8 = vector.load %arg3[%c0_5, %c512_6] : memref<2x1024xf32, #tpu.memory_space<vmem>>, vector<2x512xf32>
    %9 = arith.subf %7, %8 : vector<2x512xf32>
    %10 = arith.mulf %9, %9 : vector<2x512xf32>
    %c0_7 = arith.constant 0 : index
    %c0_8 = arith.constant 0 : index
    %11 = vector.load %arg4[%c0_7, %c0_8] : memref<2x512xf32, #tpu.memory_space<vmem>>, vector<2x512xf32>
    %12 = arith.addf %6, %10 : vector<2x512xf32>
    %13 = arith.addf %11, %12 : vector<2x512xf32>
    %c0_9 = arith.constant 0 : index
    %c0_10 = arith.constant 0 : index
    %14 = vector.load %arg4[%c0_9, %c0_10] : memref<2x512xf32, #tpu.memory_space<vmem>>, vector<2x512xf32>
    tpu.vector_store %arg4[%c0_9, %c0_10], %13 {strides = array<i32>} : memref<2x512xf32, #tpu.memory_space<vmem>>, vector<2x512xf32>,
    return
  }
  func.func @transform_0(%arg0: i32, %arg1: i32) -> (i32, i32) {
    %c1_i32 = arith.constant 1 : i32
    %0 = arith.muli %arg0, %c1_i32 : i32
    %1 = arith.addi %0, %arg1 : i32
    %c0_i32 = arith.constant 0 : i32
    %2 = arith.minsi %1, %c0_i32 : i32
    %c0_i32_0 = arith.constant 0 : i32
    %c0_i32_1 = arith.constant 0 : i32
    return %c0_i32_0, %2 : i32, i32
  }
  func.func @transform_1(%arg0: i32, %arg1: i32) -> (i32, i32) {
    %c1_i32 = arith.constant 1 : i32
    %0 = arith.muli %arg0, %c1_i32 : i32
    %1 = arith.addi %0, %arg1 : i32
    %c0_i32 = arith.constant 0 : i32
    %2 = arith.minsi %1, %c0_i32 : i32
    %c0_i32_0 = arith.constant 0 : i32
    %c0_i32_1 = arith.constant 0 : i32
    return %c0_i32_0, %2 : i32, i32
  }
  func.func @transform_2(%arg0: i32, %arg1: i32) -> (i32, i32) {
    %c0_i32 = arith.constant 0 : i32
    %c0_i32_0 = arith.constant 0 : i32
    return %c0_i32, %arg0 : i32, i32
  }
}

</mosaic_0001>

<llo_original>
// kernel: tpu_custom_call.1
$region0: #{tpu_custom_call.1}
  #allocation0 [shape = 'u32[]', space=smem, size = 0x4, offset = 0x4, fixed_abs, tag = 'smem constant byte address 0x4 - core index']
  #allocation1 [shape = 'u32[144,128]{1,0:T(1,128)}', space=vmem, size = 0x12000, scoped, tag = 'internal scratch']
  %s0 = inlined_call_operand.hbm [shape: f32[2,1024], index: 0, kind: input, shape index: {}]
  %s1 = inlined_call_operand.hbm [shape: f32[2,1024], index: 1, kind: input, shape index: {}]
  %s2 = inlined_call_operand.hbm [shape: f32[2,512], index: 2, kind: output, shape index: {}]
  %s3 = sld [smem:[#allocation0]]
  $region30: #{tpu_custom_call.1} parent=0
    _
  %s5 = ssub.s32 1, %s3
  %s6 = scalar_select 0, %s5, %s3
  $region1: #{tpu_custom_call.1} parent=0
    #allocation2 [shape = 'u8[8192]{0}', space=vmem, size = 0x2000, scoped, tag = 'input window, operand 0, single buffered']
    #allocation3 [shape = 's32[1]{0}', space=sflag, size = 0x4, scoped, tag = 'scoped memory for tpu_custom_call.1']
    #allocation4 [shape = 's32[1]{0}', space=sflag, size = 0x4, scoped, tag = 'scoped memory for tpu_custom_call.1']
    #allocation5 [shape = 'u8[8192]{0}', space=vmem, size = 0x2000, scoped, tag = 'input window, operand 1, single buffered']
    #allocation6 [shape = 's32[1]{0}', space=sflag, size = 0x4, scoped, tag = 'scoped memory for tpu_custom_call.1']
    #allocation7 [shape = 'u8[4096]{0}', space=vmem, size = 0x1000, scoped, tag = 'output window, operand 0, single buffered']
    %7 = vsyncpa [#allocation3], 0
    %8 = vsyncpa [#allocation6], 0
    %9 = vsyncpa [#allocation4], 0
    // Predicated region
    $region2: #{tpu_custom_call.1} parent=1 // pred_check
      _
    $region3: #{tpu_custom_call.1} parent=1 // pred_check_branch
      %11 = sbr.rel (0) target = $region5
    $region4: #{tpu_custom_call.1} parent=1 // pred_region
      %s12 = sadd.s32 0, 0
      %p13 = scmp.lt.s32.totalorder %s12, 0
      %s14 = scalar_select %p13, %s12, 0
      %s15 = smul.u32 8, %s14
      %s17 = ssub.s32 256, 256
      %18 = vsyncadd [#allocation3], %s17
      %s19 = smul.addr %s15, 32
      %s20 = scalar_lea.hbm %s0, %s19
      %s22 = sshll.u32 [#allocation2], 4
      %s23 = int_to_ptr.vmem [resolvable:$true] %s22
      %25 = dma.hbm_to_vmem [thread:$0]  %s20, 256, %s23, [#allocation3]
    $region5: #{tpu_custom_call.1} parent=1 // pred_fallthru
      _
    // Predicated region
    $region6: #{tpu_custom_call.1} parent=1 // pred_check
      _
    $region7: #{tpu_custom_call.1} parent=1 // pred_check_branch
      %27 = sbr.rel (0) target = $region9
    $region8: #{tpu_custom_call.1} parent=1 // pred_region
      %s28 = sadd.s32 0, 0
      %p29 = scmp.lt.s32.totalorder %s28, 0
      %s30 = scalar_select %p29, %s28, 0
      %s31 = smul.u32 8, %s30
      %s33 = ssub.s32 256, 256
      %34 = vsyncadd [#allocation6], %s33
      %s35 = smul.addr %s31, 32
      %s36 = scalar_lea.hbm %s1, %s35
      %s38 = sshll.u32 [#allocation5], 4
      %s39 = int_to_ptr.vmem [resolvable:$true] %s38
      %41 = dma.hbm_to_vmem [thread:$0]  %s36, 256, %s39, [#allocation6]
    $region9: #{tpu_custom_call.1} parent=1 // pred_fallthru
      _
    // Predicated region
    $region10: #{tpu_custom_call.1} parent=1 // pred_check
      _
    $region11: #{tpu_custom_call.1} parent=1 // pred_check_branch
      %43 = sbr.rel (0) target = $region13
    $region12: #{tpu_custom_call.1} parent=1 // pred_region
      %44 = dma.done [#allocation3], 256
    $region13: #{tpu_custom_call.1} parent=1 // pred_fallthru
      _
    // Predicated region
    $region14: #{tpu_custom_call.1} parent=1 // pred_check
      _
    $region15: #{tpu_custom_call.1} parent=1 // pred_check_branch
      %46 = sbr.rel (0) target = $region17
    $region16: #{tpu_custom_call.1} parent=1 // pred_region
      %47 = dma.done [#allocation6], 256
    $region17: #{tpu_custom_call.1} parent=1 // pred_fallthru
      _
    %s48 = sadd.s32 0, 0
    %p49 = scmp.lt.s32.totalorder %s48, 0
    %s50 = scalar_select %p49, %s48, 0
    %s51 = smul.u32 8, %s50
    %s52 = sadd.s32 0, 0
    %p53 = scmp.lt.s32.totalorder %s52, 0
    %s54 = scalar_select %p53, %s52, 0
    %s55 = smul.u32 8, %s54
    %p56 = scmp.eq.s32.totalorder 0, 0
    // Predicated region
    $region18: #{tpu_custom_call.1} parent=1 // pred_check
      %p57 = pneg %p56
    $region19: #{tpu_custom_call.1} parent=1 // pred_check_branch
      %59 = sbr.rel (%p57) target = $region21
    $region20: #{tpu_custom_call.1} parent=1 // pred_region
      %60 = vst [vmem:[#allocation7] sm:$0xff] 0.0
    $region21: #{tpu_custom_call.1} parent=1 // pred_fallthru
      _
    %v61 = vld [vmem:[#allocation2] sm:$0xff]
    %v62 = vld [vmem:[#allocation5] sm:$0xff]
    %v63 = vsub.f32 %v61, %v62
    %v64 = vmul.f32 %v63, %v63
    %v65 = vld [vmem:[#allocation2 + $0x8] sm:$0xff]
    %v66 = vld [vmem:[#allocation5 + $0x8] sm:$0xff]
    %v67 = vsub.f32 %v65, %v66
    %v68 = vmul.f32 %v67, %v67
    %v69 = vld [vmem:[#allocation7] sm:$0xff]
    %v70 = vadd.f32 %v64, %v68
    %v71 = vadd.f32 %v69, %v70
    %72 = vst [vmem:[#allocation7] sm:$0xff] %v71
    // Predicated region
    $region22: #{tpu_custom_call.1} parent=1 // pred_check
      _
    $region23: #{tpu_custom_call.1} parent=1 // pred_check_branch
      %74 = sbr.rel (0) target = $region25
    $region24: #{tpu_custom_call.1} parent=1 // pred_region
      %s76 = ssub.s32 128, 128
      %77 = vsyncadd [#allocation4], %s76
      %s79 = sshll.u32 [#allocation7], 4
      %s80 = int_to_ptr.vmem [resolvable:$true] %s79
      %82 = dma.vmem_to_hbm [thread:$0]  %s80, 128, %s2, [#allocation4]
    $region25: #{tpu_custom_call.1} parent=1 // pred_fallthru
      _
    // Predicated region
    $region26: #{tpu_custom_call.1} parent=1 // pred_check
      _
    $region27: #{tpu_custom_call.1} parent=1 // pred_check_branch
      %84 = sbr.rel (0) target = $region29
    $region28: #{tpu_custom_call.1} parent=1 // pred_region
      %85 = dma.done [#allocation4], 128
    $region29: #{tpu_custom_call.1} parent=1 // pred_fallthru
      _
    %86 = vsyncpa [#allocation3], 1
    %87 = vsyncpa [#allocation6], 1
    %88 = vsyncpa [#allocation4], 1

</llo_original>
